<compile_context>
chip_gen: v7x
topology: tpu7x:2x2x1
jax: 0.10.0
libtpu: 0.0.40
codegen_flags: <defaults>
</compile_context>

<pallas_src>
import jax
import jax.numpy as jnp
from jax.experimental import pallas as pl
from jax.experimental.pallas import tpu as pltpu


# ------------------------------- kernels -------------------------------------

def _disc_kernel_fused(x_ref, w1s_ref, b1s_ref, w2_ref, b2_ref, w3_ref, b3_ref,
                       o_ref):
    """Linear1 and shortcut fused into one MXU matmul (requires D % 128 == 0)."""
    D = w2_ref.shape[0]
    x = x_ref[...].astype(w1s_ref.dtype)  # in-kernel cast (no wrapper HBM pass)

    # Fused first layer + shortcut: single MXU pass over x, output width 2D.
    h_sc = jnp.dot(x, w1s_ref[...], preferred_element_type=jnp.float32) + b1s_ref[...]
    h = jnp.maximum(h_sc[:, :D], 0.0)        # ReLU(Linear1(x))    (f32)
    sc = h_sc[:, D:]                         # Linear_shortcut(x)  (f32)

    # block: Linear2 -> ReLU -> Linear3 (f32 accumulate, bias/ReLU in f32)
    h = jnp.dot(h.astype(w2_ref.dtype), w2_ref[...],
                preferred_element_type=jnp.float32) + b2_ref[...]
    h = jnp.maximum(h, 0.0)
    blk = jnp.dot(h.astype(w3_ref.dtype), w3_ref[...],
                  preferred_element_type=jnp.float32) + b3_ref[...]

    o_ref[...] = (blk + sc).astype(o_ref.dtype)


def _disc_kernel_split(x_ref, w1_ref, b1_ref, ws_ref, bs_ref,
                       w2_ref, b2_ref, w3_ref, b3_ref, o_ref):
    """Unfused fallback for D % 128 != 0 (slicing a fused output would copy)."""
    x = x_ref[...].astype(w1_ref.dtype)
    h = jnp.maximum(
        jnp.dot(x, w1_ref[...], preferred_element_type=jnp.float32) + b1_ref[...], 0.0)
    sc = jnp.dot(x, ws_ref[...], preferred_element_type=jnp.float32) + bs_ref[...]
    h = jnp.maximum(
        jnp.dot(h.astype(w2_ref.dtype), w2_ref[...],
                preferred_element_type=jnp.float32) + b2_ref[...], 0.0)
    blk = jnp.dot(h.astype(w3_ref.dtype), w3_ref[...],
                  preferred_element_type=jnp.float32) + b3_ref[...]
    o_ref[...] = (blk + sc).astype(o_ref.dtype)


# --------------------------- chip / tiling helpers ----------------------------

def _chip_info():
    """(dual_core, vmem_capacity_bytes, default_compute_dtype) for the local TPU."""
    kind = ""
    try:
        kind = jax.devices()[0].device_kind.lower()
    except Exception:
        pass
    is_v7 = ("v7" in kind) or ("7x" in kind)
    dual_core = is_v7 or ("v4" in kind) or ("v5p" in kind)
    try:
        vmem_cap = int(pltpu.get_tpu_info().vmem_capacity_bytes)
    except Exception:
        vmem_cap = (64 << 20) if is_v7 else (128 << 20)
    # bf16 weights/activations (f32 accumulate) on v6e/v7x: 2x256^2 bf16 MXU and
    # half the resident weight VMEM / DMA bytes.  v5e keeps f32 by default.
    default_dtype = jnp.bfloat16 if (is_v7 or "v6" in kind) else jnp.float32
    return dual_core, vmem_cap, default_dtype


def _pick_tb(B, dual_core):
    """Row tile choice.

    Single-TC chips (v5e/v6e): largest tile / single step — per-step overhead
    (~0.35us) and small-tile DMA density dominate at this size.
    v7x (2 TCs): >=2 steps with an EVEN step count so the "parallel" grid axis
    splits evenly across both TensorCores (odd counts idle one core 1/steps).
    """
    candidates = (512, 384, 256, 192, 128, 96, 64, 32, 16, 8)
    divisors = [t for t in candidates if t <= B and B % t == 0]
    if not dual_core:
        if B <= 512:
            return B
        return divisors[0] if divisors else B
    even = [t for t in divisors if (B // t) % 2 == 0]
    if even:
        return even[0]
    multi = [t for t in divisors if B // t >= 2]
    if multi:
        return multi[0]
    return B


# ----------------------------- parameter prep --------------------------------

def prepare_params(params, *, compute_dtype=None):
    """One-time preprocessing (hoisted out of the per-call path).

    Concatenates Linear1 | shortcut weights when D is lane-aligned and casts
    everything to the compute dtype (biases stay f32). Call once, reuse.
    """
    D = params["w1"].shape[0]
    if compute_dtype is None:
        _, _, compute_dtype = _chip_info()
    cd = jnp.dtype(compute_dtype)
    fused = (D % 128 == 0)   # slicing a fused output at a non-128 column copies
    prep = {"fused": fused, "D": D, "compute_dtype": cd}
    if fused:
        prep["w1s"] = jnp.concatenate([params["w1"], params["ws"]], axis=1).astype(cd)
        prep["b1s"] = jnp.concatenate([params["b1"], params["bs"]], axis=1).astype(jnp.float32)
    else:
        prep["w1"] = params["w1"].astype(cd)
        prep["b1"] = params["b1"].astype(jnp.float32)
        prep["ws"] = params["ws"].astype(cd)
        prep["bs"] = params["bs"].astype(jnp.float32)
    prep["w2"] = params["w2"].astype(cd)
    prep["b2"] = params["b2"].astype(jnp.float32)
    prep["w3"] = params["w3"].astype(cd)
    prep["b3"] = params["b3"].astype(jnp.float32)
    return prep


# --------------------------------- wrapper ------------------------------------

def discriminator_bn(x, prep, *, tb=None):
    """x: (B, D) — the only per-call HBM traffic besides the resident weights."""
    B, D = x.shape
    assert D == prep["D"]
    out_dtype = x.dtype
    cd = prep["compute_dtype"]

    dual_core, vmem_cap, _ = _chip_info()
    if tb is None:
        tb = _pick_tb(B, dual_core)
    assert B % tb == 0  # TODO(synk): pad ragged batch sizes before calling.

    const = lambda i: (0, 0)
    single = pl.Buffered(1)  # constant index_map -> double-buffering is VMEM waste

    if prep["fused"]:
        kernel = _disc_kernel_fused
        weight_args = (prep["w1s"], prep["b1s"], prep["w2"], prep["b2"],
                       prep["w3"], prep["b3"])
        weight_specs = [
            pl.BlockSpec((D, 2 * D), const, pipeline_mode=single),
            pl.BlockSpec((1, 2 * D), const, pipeline_mode=single),
            pl.BlockSpec((D, D), const, pipeline_mode=single),
            pl.BlockSpec((1, D), const, pipeline_mode=single),
            pl.BlockSpec((D, D), const, pipeline_mode=single),
            pl.BlockSpec((1, D), const, pipeline_mode=single),
        ]
    else:
        kernel = _disc_kernel_split
        weight_args = (prep["w1"], prep["b1"], prep["ws"], prep["bs"],
                       prep["w2"], prep["b2"], prep["w3"], prep["b3"])
        weight_specs = [
            pl.BlockSpec((D, D), const, pipeline_mode=single),
            pl.BlockSpec((1, D), const, pipeline_mode=single),
        ] * 4

    # VMEM budget: resident single-buffered weights + double-buffered x/out
    # tiles + in-kernel intermediates (h_sc (tb,2D) f32, h (tb,D) f32, casts).
    itw = jnp.dtype(cd).itemsize
    itx = jnp.dtype(x.dtype).itemsize
    ito = jnp.dtype(out_dtype).itemsize
    weight_bytes = 4 * D * D * itw + 4 * D * 4
    io_bytes = 2 * tb * D * itx + 2 * tb * D * ito
    inter_bytes = tb * D * (8 + 4 + 4) + 2 * tb * D * itw
    vmem_limit = int(1.3 * (weight_bytes + io_bytes + inter_bytes)) + (4 << 20)
    vmem_limit = max(32 << 20, min(vmem_limit, vmem_cap - (8 << 20)))
    # TODO(synk): when 4*D^2 resident weights approach ~half the VMEM budget
    # (bf16 D~2048 / f32 D~1400 on v7x's 64 MiB), move weights to
    # memory_space=pl.ANY and add an "arbitrary" K-reduction grid axis with an
    # f32 VMEM accumulator instead of keeping them fully resident.

    flops = 2 * B * 4 * D * D
    bytes_accessed = weight_bytes + B * D * (itx + ito)
    cost = pl.CostEstimate(flops=flops, transcendentals=0,
                           bytes_accessed=bytes_accessed)

    return pl.pallas_call(
        kernel,
        out_shape=jax.ShapeDtypeStruct((B, D), out_dtype),
        grid_spec=pltpu.PrefetchScalarGridSpec(
            num_scalar_prefetch=0,
            grid=(B // tb,),
            in_specs=[pl.BlockSpec((tb, D), lambda i: (i, 0))] + weight_specs,
            out_specs=pl.BlockSpec((tb, D), lambda i: (i, 0)),
        ),
        compiler_params=pltpu.CompilerParams(
            dimension_semantics=("parallel",),
            vmem_limit_bytes=vmem_limit,
        ),
        cost_estimate=cost,
    )(x, *weight_args)


# ------------------------------- test harness --------------------------------

def _init_params(key, D):
    """Deterministic PyTorch-Linear-style init; weights pre-transposed (D_in, D_out)."""
    bound = 1.0 / jnp.sqrt(D)
    keys = jax.random.split(key, 8)

    def lin(kw, kb):
        w_pt = jax.random.uniform(kw, (D, D), jnp.float32, -bound, bound)  # (out, in)
        b = jax.random.uniform(kb, (D,), jnp.float32, -bound, bound)
        return w_pt.T, b.reshape(1, D)  # pre-transposed for x @ W

    w1, b1 = lin(keys[0], keys[1])
    w2, b2 = lin(keys[2], keys[3])
    w3, b3 = lin(keys[4], keys[5])
    ws, bs = lin(keys[6], keys[7])
    return dict(w1=w1, b1=b1, w2=w2, b2=b2, w3=w3, b3=b3, ws=ws, bs=bs)


def _reference(x, p):
    h = jnp.maximum(x @ p["w1"] + p["b1"], 0.0)
    h = jnp.maximum(h @ p["w2"] + p["b2"], 0.0)
    blk = h @ p["w3"] + p["b3"]
    sc = x @ p["ws"] + p["bs"]
    return blk + sc


if __name__ == "__main__":
    B, D = 256, 128  # D lane-aligned -> fused path; B gives an even step count
    key = jax.random.PRNGKey(0)
    kx, kp = jax.random.split(key)
    x = jax.random.normal(kx, (B, D), jnp.float32)
    params = _init_params(kp, D)

    ref = _reference(x, params)

    # f32 compute path (tight tolerance)
    prep_f32 = prepare_params(params, compute_dtype=jnp.float32)
    out = jax.block_until_ready(discriminator_bn(x, prep_f32))
    assert out.shape == (B, D)
    assert jnp.allclose(out, ref, atol=1e-4, rtol=1e-4)

    # bf16 compute path (f32 accumulate) — loose tolerance
    prep_bf16 = prepare_params(params, compute_dtype=jnp.bfloat16)
    out_bf16 = jax.block_until_ready(discriminator_bn(x, prep_bf16))
    assert out_bf16.shape == (B, D)
    assert bool(jnp.all(jnp.isfinite(out_bf16)))
    assert jnp.allclose(out_bf16, ref, atol=1e-1, rtol=1e-1)

    # chip-default compute dtype (bf16 on v6e/v7x, f32 on v5e) — loose tolerance
    prep_def = prepare_params(params)
    out_def = jax.block_until_ready(discriminator_bn(x, prep_def))
    assert out_def.shape == (B, D)
    assert jnp.allclose(out_def, ref, atol=1e-1, rtol=1e-1)

    print("KERNEL_OK")
</pallas_src>

<mosaic_0001>
module attributes {stable_mosaic.version = 11 : i64} {
  func.func @_disc_kernel_fused(%arg0: i32, %arg1: memref<256x128xf32, #tpu.memory_space<vmem>>, %arg2: memref<128x256xf32, #tpu.memory_space<vmem>>, %arg3: memref<1x256xf32, #tpu.memory_space<vmem>>, %arg4: memref<128x128xf32, #tpu.memory_space<vmem>>, %arg5: memref<1x128xf32, #tpu.memory_space<vmem>>, %arg6: memref<128x128xf32, #tpu.memory_space<vmem>>, %arg7: memref<1x128xf32, #tpu.memory_space<vmem>>, %arg8: memref<256x128xf32, #tpu.memory_space<vmem>>) attributes {dimension_semantics = [#tpu.dimension_semantics<parallel>], iteration_bounds = array<i64: 1>, scalar_prefetch = 0 : i64, scratch_operands = 0 : i64, tpu.core_type = #tpu.core_type<tc>, window_params = [{transform_indices = @transform_0, window_bounds = array<i64: 256, 128>}, {pipeline_mode = #tpu.pipeline_mode<synchronous>, transform_indices = @transform_1, window_bounds = array<i64: 128, 256>}, {pipeline_mode = #tpu.pipeline_mode<synchronous>, transform_indices = @transform_2, window_bounds = array<i64: 1, 256>}, {pipeline_mode = #tpu.pipeline_mode<synchronous>, transform_indices = @transform_3, window_bounds = array<i64: 128, 128>}, {pipeline_mode = #tpu.pipeline_mode<synchronous>, transform_indices = @transform_4, window_bounds = array<i64: 1, 128>}, {pipeline_mode = #tpu.pipeline_mode<synchronous>, transform_indices = @transform_5, window_bounds = array<i64: 128, 128>}, {pipeline_mode = #tpu.pipeline_mode<synchronous>, transform_indices = @transform_6, window_bounds = array<i64: 1, 128>}, {transform_indices = @transform_7, window_bounds = array<i64: 256, 128>}]} {
    %c0 = arith.constant 0 : index
    %c0_0 = arith.constant 0 : index
    %0 = vector.load %arg1[%c0, %c0_0] : memref<256x128xf32, #tpu.memory_space<vmem>>, vector<256x128xf32>
    %c0_1 = arith.constant 0 : index
    %c0_2 = arith.constant 0 : index
    %1 = vector.load %arg2[%c0_1, %c0_2] : memref<128x256xf32, #tpu.memory_space<vmem>>, vector<128x256xf32>
    %cst = arith.constant dense<0.000000e+00> : vector<256x256xf32>
    %2 = tpu.matmul %0, %1, %cst {dimension_numbers = #tpu.dot_dimension_numbers<[1], [0], [0], [1], [0, 0, 1, 1], [], []>} : vector<256x128xf32>, vector<128x256xf32>, vector<256x256xf32> -> vector<256x256xf32>
    %c0_3 = arith.constant 0 : index
    %c0_4 = arith.constant 0 : index
    %3 = vector.load %arg3[%c0_3, %c0_4] : memref<1x256xf32, #tpu.memory_space<vmem>>, vector<1x256xf32>
    %4 = vector.broadcast %3 : vector<1x256xf32> to vector<256x256xf32>
    %5 = arith.addf %2, %4 : vector<256x256xf32>
    %6 = vector.extract_strided_slice %5 {offsets = [0, 0], sizes = [256, 128], strides = [1, 1]} : vector<256x256xf32> to vector<256x128xf32>
    %cst_5 = arith.constant 0.000000e+00 : f32
    %7 = vector.broadcast %cst_5 : f32 to vector<256x128xf32>
    %8 = arith.maximumf %6, %7 : vector<256x128xf32>
    %9 = vector.extract_strided_slice %5 {offsets = [0, 128], sizes = [256, 128], strides = [1, 1]} : vector<256x256xf32> to vector<256x128xf32>
    %c0_6 = arith.constant 0 : index
    %c0_7 = arith.constant 0 : index
    %10 = vector.load %arg4[%c0_6, %c0_7] : memref<128x128xf32, #tpu.memory_space<vmem>>, vector<128x128xf32>
    %cst_8 = arith.constant dense<0.000000e+00> : vector<256x128xf32>
    %11 = tpu.matmul %8, %10, %cst_8 {dimension_numbers = #tpu.dot_dimension_numbers<[1], [0], [0], [1], [0, 0, 1, 1], [], []>} : vector<256x128xf32>, vector<128x128xf32>, vector<256x128xf32> -> vector<256x128xf32>
    %c0_9 = arith.constant 0 : index
    %c0_10 = arith.constant 0 : index
    %12 = vector.load %arg5[%c0_9, %c0_10] : memref<1x128xf32, #tpu.memory_space<vmem>>, vector<1x128xf32>
    %13 = vector.broadcast %12 : vector<1x128xf32> to vector<256x128xf32>
    %14 = arith.addf %11, %13 : vector<256x128xf32>
    %cst_11 = arith.constant 0.000000e+00 : f32
    %15 = vector.broadcast %cst_11 : f32 to vector<256x128xf32>
    %16 = arith.maximumf %14, %15 : vector<256x128xf32>
    %c0_12 = arith.constant 0 : index
    %c0_13 = arith.constant 0 : index
    %17 = vector.load %arg6[%c0_12, %c0_13] : memref<128x128xf32, #tpu.memory_space<vmem>>, vector<128x128xf32>
    %cst_14 = arith.constant dense<0.000000e+00> : vector<256x128xf32>
    %18 = tpu.matmul %16, %17, %cst_14 {dimension_numbers = #tpu.dot_dimension_numbers<[1], [0], [0], [1], [0, 0, 1, 1], [], []>} : vector<256x128xf32>, vector<128x128xf32>, vector<256x128xf32> -> vector<256x128xf32>
    %c0_15 = arith.constant 0 : index
    %c0_16 = arith.constant 0 : index
    %19 = vector.load %arg7[%c0_15, %c0_16] : memref<1x128xf32, #tpu.memory_space<vmem>>, vector<1x128xf32>
    %20 = vector.broadcast %19 : vector<1x128xf32> to vector<256x128xf32>
    %21 = arith.addf %18, %20 : vector<256x128xf32>
    %22 = arith.addf %21, %9 : vector<256x128xf32>
    %c0_17 = arith.constant 0 : index
    %c0_18 = arith.constant 0 : index
    %23 = vector.load %arg8[%c0_17, %c0_18] : memref<256x128xf32, #tpu.memory_space<vmem>>, vector<256x128xf32>
    tpu.vector_store %arg8[%c0_17, %c0_18], %22 {strides = array<i32>} : memref<256x128xf32, #tpu.memory_space<vmem>>, vector<256x128xf32>,
    return
  }
  func.func @transform_0(%arg0: i32) -> (i32, i32) {
    %c0_i32 = arith.constant 0 : i32
    %c0_i32_0 = arith.constant 0 : i32
    return %arg0, %c0_i32 : i32, i32
  }
  func.func @transform_1(%arg0: i32) -> (i32, i32) {
    %c0_i32 = arith.constant 0 : i32
    %c0_i32_0 = arith.constant 0 : i32
    %c0_i32_1 = arith.constant 0 : i32
    return %c0_i32, %c0_i32_0 : i32, i32
  }
  func.func @transform_2(%arg0: i32) -> (i32, i32) {
    %c0_i32 = arith.constant 0 : i32
    %c0_i32_0 = arith.constant 0 : i32
    %c0_i32_1 = arith.constant 0 : i32
    return %c0_i32, %c0_i32_0 : i32, i32
  }
  func.func @transform_3(%arg0: i32) -> (i32, i32) {
    %c0_i32 = arith.constant 0 : i32
    %c0_i32_0 = arith.constant 0 : i32
    %c0_i32_1 = arith.constant 0 : i32
    return %c0_i32, %c0_i32_0 : i32, i32
  }
  func.func @transform_4(%arg0: i32) -> (i32, i32) {
    %c0_i32 = arith.constant 0 : i32
    %c0_i32_0 = arith.constant 0 : i32
    %c0_i32_1 = arith.constant 0 : i32
    return %c0_i32, %c0_i32_0 : i32, i32
  }
  func.func @transform_5(%arg0: i32) -> (i32, i32) {
    %c0_i32 = arith.constant 0 : i32
    %c0_i32_0 = arith.constant 0 : i32
    %c0_i32_1 = arith.constant 0 : i32
    return %c0_i32, %c0_i32_0 : i32, i32
  }
  func.func @transform_6(%arg0: i32) -> (i32, i32) {
    %c0_i32 = arith.constant 0 : i32
    %c0_i32_0 = arith.constant 0 : i32
    %c0_i32_1 = arith.constant 0 : i32
    return %c0_i32, %c0_i32_0 : i32, i32
  }
  func.func @transform_7(%arg0: i32) -> (i32, i32) {
    %c0_i32 = arith.constant 0 : i32
    %c0_i32_0 = arith.constant 0 : i32
    return %arg0, %c0_i32 : i32, i32
  }
}

</mosaic_0001>

<llo_original>
// kernel: tpu_custom_call.1
$region0: #{tpu_custom_call.1}
  #allocation0 [shape = 'u32[]', space=smem, size = 0x4, offset = 0x4, fixed_abs, tag = 'smem constant byte address 0x4 - core index']
  #allocation1 [shape = 'u32[144,128]{1,0:T(1,128)}', space=vmem, size = 0x12000, scoped, tag = 'internal scratch']
  %s0 = inlined_call_operand.hbm [shape: f32[256,128], index: 0, kind: input, shape index: {}]
  %s1 = inlined_call_operand.hbm [shape: f32[128,256], index: 1, kind: input, shape index: {}]
  %s2 = inlined_call_operand.vmem [shape: f32[1,256], index: 2, kind: input, shape index: {}]
  %s3 = inlined_call_operand.hbm [shape: f32[128,128], index: 3, kind: input, shape index: {}]
  %s4 = inlined_call_operand.vmem [shape: f32[1,128], index: 4, kind: input, shape index: {}]
  %s5 = inlined_call_operand.hbm [shape: f32[128,128], index: 5, kind: input, shape index: {}]
  %s6 = inlined_call_operand.vmem [shape: f32[1,128], index: 6, kind: input, shape index: {}]
  %s7 = inlined_call_operand.hbm [shape: f32[256,128], index: 7, kind: output, shape index: {}]
  %s8 = sld [smem:[#allocation0]]
  $region54: #{tpu_custom_call.1} parent=0
    _
  %s10 = ssub.s32 1, %s8
  %s11 = scalar_select 0, %s10, %s8
  $region1: #{tpu_custom_call.1} parent=0
    #allocation2 [shape = 'u8[131072]{0}', space=vmem, size = 0x20000, scoped, tag = 'input window, operand 0, single buffered']
    #allocation3 [shape = 's32[1]{0}', space=sflag, size = 0x4, scoped, tag = 'scoped memory for tpu_custom_call.1']
    #allocation4 [shape = 's32[1]{0}', space=sflag, size = 0x4, scoped, tag = 'scoped memory for tpu_custom_call.1']
    #allocation5 [shape = 'u8[131072]{0}', space=vmem, size = 0x20000, scoped, tag = 'input window, operand 1, single buffered']
    #allocation6 [shape = 's32[1]{0}', space=sflag, size = 0x4, scoped, tag = 'scoped memory for tpu_custom_call.1']
    #allocation7 [shape = 'u8[65536]{0}', space=vmem, size = 0x10000, scoped, tag = 'input window, operand 3, single buffered']
    #allocation8 [shape = 'u8[65536]{0}', space=vmem, size = 0x10000, scoped, tag = 'input window, operand 5, single buffered']
    #allocation9 [shape = 's32[1]{0}', space=sflag, size = 0x4, scoped, tag = 'scoped memory for tpu_custom_call.1']
    #allocation10 [shape = 'u8[131072]{0}', space=vmem, size = 0x20000, scoped, tag = 'output window, operand 0, single buffered']
    %12 = vsyncpa [#allocation3], 0
    %13 = vsyncpa [#allocation6], 0
    %14 = vsyncpa [#allocation9], 0
    %15 = vsyncpa [#allocation4], 0
    // Predicated region
    $region2: #{tpu_custom_call.1} parent=1 // pred_check
      _
    $region3: #{tpu_custom_call.1} parent=1 // pred_check_branch
      %17 = sbr.rel (0) target = $region5
    $region4: #{tpu_custom_call.1} parent=1 // pred_region
      %s19 = ssub.s32 4096, 4096
      %20 = vsyncadd [#allocation3], %s19
      %s21 = sshll.u32 [#allocation2], 4
      %s22 = int_to_ptr.vmem [resolvable:$true] %s21
      %27 = dma.hbm_to_vmem [thread:$0]  %s0, 4096, %s22, [#allocation3], 128, 128, 8
    $region5: #{tpu_custom_call.1} parent=1 // pred_fallthru
      _
    // Predicated region
    $region6: #{tpu_custom_call.1} parent=1 // pred_check
      _
    $region7: #{tpu_custom_call.1} parent=1 // pred_check_branch
      %29 = sbr.rel (0) target = $region9
    $region8: #{tpu_custom_call.1} parent=1 // pred_region
      %s31 = ssub.s32 4096, 4096
      %32 = vsyncadd [#allocation6], %s31
      %s33 = sshll.u32 [#allocation5], 4
      %s34 = int_to_ptr.vmem [resolvable:$true] %s33
      %39 = dma.hbm_to_vmem [thread:$0]  %s1, 4096, %s34, [#allocation6], 256, 256, 16
    $region9: #{tpu_custom_call.1} parent=1 // pred_fallthru
      _
    // Predicated region
    $region10: #{tpu_custom_call.1} parent=1 // pred_check
      _
    $region11: #{tpu_custom_call.1} parent=1 // pred_check_branch
      %41 = sbr.rel (0) target = $region13
    $region12: #{tpu_custom_call.1} parent=1 // pred_region
      _
    $region13: #{tpu_custom_call.1} parent=1 // pred_fallthru
      _
    // Predicated region
    $region14: #{tpu_custom_call.1} parent=1 // pred_check
      _
    $region15: #{tpu_custom_call.1} parent=1 // pred_check_branch
      %43 = sbr.rel (0) target = $region17
    $region16: #{tpu_custom_call.1} parent=1 // pred_region
      %s45 = ssub.s32 2048, 2048
      %46 = vsyncadd [#allocation6], %s45
      %s47 = sshll.u32 [#allocation7], 4
      %s48 = int_to_ptr.vmem [resolvable:$true] %s47
      %53 = dma.hbm_to_vmem [thread:$0]  %s3, 2048, %s48, [#allocation6], 128, 128, 8
    $region17: #{tpu_custom_call.1} parent=1 // pred_fallthru
      _
    // Predicated region
    $region18: #{tpu_custom_call.1} parent=1 // pred_check
      _
    $region19: #{tpu_custom_call.1} parent=1 // pred_check_branch
      %55 = sbr.rel (0) target = $region21
    $region20: #{tpu_custom_call.1} parent=1 // pred_region
      _
    $region21: #{tpu_custom_call.1} parent=1 // pred_fallthru
      _
    // Predicated region
    $region22: #{tpu_custom_call.1} parent=1 // pred_check
      _
    $region23: #{tpu_custom_call.1} parent=1 // pred_check_branch
      %57 = sbr.rel (0) target = $region25
    $region24: #{tpu_custom_call.1} parent=1 // pred_region
      %s59 = ssub.s32 2048, 2048
      %60 = vsyncadd [#allocation9], %s59
      %s61 = sshll.u32 [#allocation8], 4
      %s62 = int_to_ptr.vmem [resolvable:$true] %s61
      %67 = dma.hbm_to_vmem [thread:$0]  %s5, 2048, %s62, [#allocation9], 128, 128, 8
    $region25: #{tpu_custom_call.1} parent=1 // pred_fallthru
      _
    // Predicated region
    $region26: #{tpu_custom_call.1} parent=1 // pred_check
      _
    $region27: #{tpu_custom_call.1} parent=1 // pred_check_branch
      %69 = sbr.rel (0) target = $region29
    $region28: #{tpu_custom_call.1} parent=1 // pred_region
      _
    $region29: #{tpu_custom_call.1} parent=1 // pred_fallthru
      _
    // Predicated region
    $region30: #{tpu_custom_call.1} parent=1 // pred_check
      _
    $region31: #{tpu_custom_call.1} parent=1 // pred_check_branch
      %71 = sbr.rel (0) target = $region33
    $region32: #{tpu_custom_call.1} parent=1 // pred_region
      %72 = dma.done [#allocation3], 4096
    $region33: #{tpu_custom_call.1} parent=1 // pred_fallthru
      _
    // Predicated region
    $region34: #{tpu_custom_call.1} parent=1 // pred_check
      _
    $region35: #{tpu_custom_call.1} parent=1 // pred_check_branch
      %74 = sbr.rel (0) target = $region37
    $region36: #{tpu_custom_call.1} parent=1 // pred_region
      %75 = dma.done [#allocation6], 4096
    $region37: #{tpu_custom_call.1} parent=1 // pred_fallthru
      _
    // Predicated region
    $region38: #{tpu_custom_call.1} parent=1 // pred_check
      _
    $region39: #{tpu_custom_call.1} parent=1 // pred_check_branch
      %77 = sbr.rel (0) target = $region41
    $region40: #{tpu_custom_call.1} parent=1 // pred_region
      %78 = dma.done [#allocation6], 2048
    $region41: #{tpu_custom_call.1} parent=1 // pred_fallthru
      _
    // Predicated region
    $region42: #{tpu_custom_call.1} parent=1 // pred_check
      _
    $region43: #{tpu_custom_call.1} parent=1 // pred_check_branch
      %80 = sbr.rel (0) target = $region45
    $region44: #{tpu_custom_call.1} parent=1 // pred_region
      %81 = dma.done [#allocation9], 2048
    $region45: #{tpu_custom_call.1} parent=1 // pred_fallthru
      _
    %v82 = vld [vmem:[#allocation2] sm:$0xff]
    %v83 = vld [vmem:[#allocation2 + $0x8] sm:$0xff]
    %v84 = vld [vmem:[#allocation2 + $0x10] sm:$0xff]
    %v85 = vld [vmem:[#allocation2 + $0x18] sm:$0xff]
    %v86 = vld [vmem:[#allocation2 + $0x20] sm:$0xff]
    %v87 = vld [vmem:[#allocation2 + $0x28] sm:$0xff]
    %v88 = vld [vmem:[#allocation2 + $0x30] sm:$0xff]
    %v89 = vld [vmem:[#allocation2 + $0x38] sm:$0xff]
    %v90 = vld [vmem:[#allocation2 + $0x40] sm:$0xff]
    %v91 = vld [vmem:[#allocation2 + $0x48] sm:$0xff]
    %v92 = vld [vmem:[#allocation2 + $0x50] sm:$0xff]
    %v93 = vld [vmem:[#allocation2 + $0x58] sm:$0xff]
    %v94 = vld [vmem:[#allocation2 + $0x60] sm:$0xff]
    %v95 = vld [vmem:[#allocation2 + $0x68] sm:$0xff]
    %v96 = vld [vmem:[#allocation2 + $0x70] sm:$0xff]
    %v97 = vld [vmem:[#allocation2 + $0x78] sm:$0xff]
    %v98 = vld [vmem:[#allocation2 + $0x80] sm:$0xff]
    %v99 = vld [vmem:[#allocation2 + $0x88] sm:$0xff]
    %v100 = vld [vmem:[#allocation2 + $0x90] sm:$0xff]
    %v101 = vld [vmem:[#allocation2 + $0x98] sm:$0xff]
    %v102 = vld [vmem:[#allocation2 + $0xa0] sm:$0xff]
    %v103 = vld [vmem:[#allocation2 + $0xa8] sm:$0xff]
    %v104 = vld [vmem:[#allocation2 + $0xb0] sm:$0xff]
    %v105 = vld [vmem:[#allocation2 + $0xb8] sm:$0xff]
    %v106 = vld [vmem:[#allocation2 + $0xc0] sm:$0xff]
    %v107 = vld [vmem:[#allocation2 + $0xc8] sm:$0xff]
    %v108 = vld [vmem:[#allocation2 + $0xd0] sm:$0xff]
    %v109 = vld [vmem:[#allocation2 + $0xd8] sm:$0xff]
    %v110 = vld [vmem:[#allocation2 + $0xe0] sm:$0xff]
    %v111 = vld [vmem:[#allocation2 + $0xe8] sm:$0xff]
    %v112 = vld [vmem:[#allocation2 + $0xf0] sm:$0xff]
    %v113 = vld [vmem:[#allocation2 + $0xf8] sm:$0xff]
    %v114 = vld [vmem:[#allocation5] sm:$0xff]
    %v115 = vld [vmem:[#allocation5 + $0x8] sm:$0xff]
    %v116 = vld [vmem:[#allocation5 + $0x10] sm:$0xff]
    %v117 = vld [vmem:[#allocation5 + $0x18] sm:$0xff]
    %v118 = vld [vmem:[#allocation5 + $0x20] sm:$0xff]
    %v119 = vld [vmem:[#allocation5 + $0x28] sm:$0xff]
    %v120 = vld [vmem:[#allocation5 + $0x30] sm:$0xff]
    %v121 = vld [vmem:[#allocation5 + $0x38] sm:$0xff]
    %v122 = vld [vmem:[#allocation5 + $0x40] sm:$0xff]
    %v123 = vld [vmem:[#allocation5 + $0x48] sm:$0xff]
    %v124 = vld [vmem:[#allocation5 + $0x50] sm:$0xff]
    %v125 = vld [vmem:[#allocation5 + $0x58] sm:$0xff]
    %v126 = vld [vmem:[#allocation5 + $0x60] sm:$0xff]
    %v127 = vld [vmem:[#allocation5 + $0x68] sm:$0xff]
    %v128 = vld [vmem:[#allocation5 + $0x70] sm:$0xff]
    %v129 = vld [vmem:[#allocation5 + $0x78] sm:$0xff]
    %v130 = vld [vmem:[#allocation5 + $0x80] sm:$0xff]
    %v131 = vld [vmem:[#allocation5 + $0x88] sm:$0xff]
    %v132 = vld [vmem:[#allocation5 + $0x90] sm:$0xff]
    %v133 = vld [vmem:[#allocation5 + $0x98] sm:$0xff]
    %v134 = vld [vmem:[#allocation5 + $0xa0] sm:$0xff]
    %v135 = vld [vmem:[#allocation5 + $0xa8] sm:$0xff]
    %v136 = vld [vmem:[#allocation5 + $0xb0] sm:$0xff]
    %v137 = vld [vmem:[#allocation5 + $0xb8] sm:$0xff]
    %v138 = vld [vmem:[#allocation5 + $0xc0] sm:$0xff]
    %v139 = vld [vmem:[#allocation5 + $0xc8] sm:$0xff]
    %v140 = vld [vmem:[#allocation5 + $0xd0] sm:$0xff]
    %v141 = vld [vmem:[#allocation5 + $0xd8] sm:$0xff]
    %v142 = vld [vmem:[#allocation5 + $0xe0] sm:$0xff]
    %v143 = vld [vmem:[#allocation5 + $0xe8] sm:$0xff]
    %v144 = vld [vmem:[#allocation5 + $0xf0] sm:$0xff]
    %v145 = vld [vmem:[#allocation5 + $0xf8] sm:$0xff]
    %v146 = vld [vmem:[%s2] sm:$0x3]
    %v148 = vlaneseq
    %v149 = vshrl.u32 %v148, 7
    %v150 = vsub.s32 0, %v149
    %v151 = vrot.slane %v146, %v150
    %v152 = vlaneseq
    %v153 = vshrl.u32 %v152, 7
    %v154 = vsub.s32 1, %v153
    %v155 = vrot.slane %v146, %v154
    %158 = vmatprep.subr.mxu0 %v115
    %159 = vmatpush1.msra.mxu0 %v114
    %160 = vmatprep.subr.mxu0 %v117
    %161 = vmatpush1.msra.mxu0 %v116
    %162 = vmatprep.subr.mxu0 %v119
    %163 = vmatpush1.msra.mxu0 %v118
    %164 = vmatprep.subr.mxu0 %v121
    %165 = vmatpush1.msra.mxu0 %v120
    %166 = vmatprep.subr.mxu0 %v123
    %167 = vmatpush1.msra.mxu0 %v122
    %168 = vmatprep.subr.mxu0 %v125
    %169 = vmatpush1.msra.mxu0 %v124
    %170 = vmatprep.subr.mxu0 %v127
    %171 = vmatpush1.msra.mxu0 %v126
    %172 = vmatprep.subr.mxu0 %v129
    %173 = vmatpush1.msra.mxu0 %v128
    %174 = vmatprep.subr.mxu0 %v131
    %175 = vmatpush1.msra.mxu0 %v130
    %176 = vmatprep.subr.mxu0 %v133
    %177 = vmatpush1.msra.mxu0 %v132
    %178 = vmatprep.subr.mxu0 %v135
    %179 = vmatpush1.msra.mxu0 %v134
    %180 = vmatprep.subr.mxu0 %v137
    %181 = vmatpush1.msra.mxu0 %v136
    %182 = vmatprep.subr.mxu0 %v139
    %183 = vmatpush1.msra.mxu0 %v138
    %184 = vmatprep.subr.mxu0 %v141
    %185 = vmatpush1.msra.mxu0 %v140
    %186 = vmatprep.subr.mxu0 %v143
    %187 = vmatpush1.msra.mxu0 %v142
    %188 = vmatprep.subr.mxu0 %v145
    %189 = vmatpush1.msra.mxu0 %v144
    %190 = vmatprep.subr.mxu0 0.0
    %191 = vmatpush1.msra.mxu0 0.0
    %192 = vmatprep.subr.mxu0 0.0
    %193 = vmatpush1.msra.mxu0 0.0
    %194 = vmatprep.subr.mxu0 0.0
    %195 = vmatpush1.msra.mxu0 0.0
    %196 = vmatprep.subr.mxu0 0.0
    %197 = vmatpush1.msra.mxu0 0.0
    %198 = vmatprep.subr.mxu0 0.0
    %199 = vmatpush1.msra.mxu0 0.0
    %200 = vmatprep.subr.mxu0 0.0
    %201 = vmatpush1.msra.mxu0 0.0
    %202 = vmatprep.subr.mxu0 0.0
    %203 = vmatpush1.msra.mxu0 0.0
    %204 = vmatprep.subr.mxu0 0.0
    %205 = vmatpush1.msra.mxu0 0.0
    %206 = vmatprep.subr.mxu0 0.0
    %207 = vmatpush1.msra.mxu0 0.0
    %208 = vmatprep.subr.mxu0 0.0
    %209 = vmatpush1.msra.mxu0 0.0
    %210 = vmatprep.subr.mxu0 0.0
    %211 = vmatpush1.msra.mxu0 0.0
    %212 = vmatprep.subr.mxu0 0.0
    %213 = vmatpush1.msra.mxu0 0.0
    %214 = vmatprep.subr.mxu0 0.0
    %215 = vmatpush1.msra.mxu0 0.0
    %216 = vmatprep.subr.mxu0 0.0
    %217 = vmatpush1.msra.mxu0 0.0
    %218 = vmatprep.subr.mxu0 0.0
    %219 = vmatpush1.msra.mxu0 0.0
    %220 = vmatprep.subr.mxu0 0.0
    %221 = vmatpush1.msra.mxu0 0.0
    %222 = vmatprep.mubr.f32.mxu0 0.0
    %223 = vmatmul.mubr.f32.gmra.mrb[0].mxu0 %v82
    %v224 = vpop.f32.mrb[0].mxu0
    %v225 = vadd.f32 %v151, %v224
    %v226 = vpop.f32.mrb[0].mxu0
    %v227 = vadd.f32 %v155, %v226
    %228 = vmatprep.mubr.f32.mxu0 0.0
    %229 = vmatmul.mubr.f32.gmra.mrb[0].mxu0 %v83
    %v230 = vpop.f32.mrb[0].mxu0
    %v231 = vadd.f32 %v151, %v230
    %v232 = vpop.f32.mrb[0].mxu0
    %v233 = vadd.f32 %v155, %v232
    %234 = vmatprep.mubr.f32.mxu0 0.0
    %235 = vmatmul.mubr.f32.gmra.mrb[0].mxu0 %v84
    %v236 = vpop.f32.mrb[0].mxu0
    %v237 = vadd.f32 %v151, %v236
    %v238 = vpop.f32.mrb[0].mxu0
    %v239 = vadd.f32 %v155, %v238
    %240 = vmatprep.mubr.f32.mxu0 0.0
    %241 = vmatmul.mubr.f32.gmra.mrb[0].mxu0 %v85
    %v242 = vpop.f32.mrb[0].mxu0
    %v243 = vadd.f32 %v151, %v242
    %v244 = vpop.f32.mrb[0].mxu0
    %v245 = vadd.f32 %v155, %v244
    %246 = vmatprep.mubr.f32.mxu0 0.0
    %247 = vmatmul.mubr.f32.gmra.mrb[0].mxu0 %v86
    %v248 = vpop.f32.mrb[0].mxu0
    %v249 = vadd.f32 %v151, %v248
    %v250 = vpop.f32.mrb[0].mxu0
    %v251 = vadd.f32 %v155, %v250
    %252 = vmatprep.mubr.f32.mxu0 0.0
    %253 = vmatmul.mubr.f32.gmra.mrb[0].mxu0 %v87
    %v254 = vpop.f32.mrb[0].mxu0
    %v255 = vadd.f32 %v151, %v254
    %v256 = vpop.f32.mrb[0].mxu0
    %v257 = vadd.f32 %v155, %v256
    %258 = vmatprep.mubr.f32.mxu0 0.0
    %259 = vmatmul.mubr.f32.gmra.mrb[0].mxu0 %v88
    %v260 = vpop.f32.mrb[0].mxu0
    %v261 = vadd.f32 %v151, %v260
    %v262 = vpop.f32.mrb[0].mxu0
    %v263 = vadd.f32 %v155, %v262
    %264 = vmatprep.mubr.f32.mxu0 0.0
    %265 = vmatmul.mubr.f32.gmra.mrb[0].mxu0 %v89
    %v266 = vpop.f32.mrb[0].mxu0
    %v267 = vadd.f32 %v151, %v266
    %v268 = vpop.f32.mrb[0].mxu0
    %v269 = vadd.f32 %v155, %v268
    %270 = vmatprep.mubr.f32.mxu0 0.0
    %271 = vmatmul.mubr.f32.gmra.mrb[0].mxu0 %v90
    %v272 = vpop.f32.mrb[0].mxu0
    %v273 = vadd.f32 %v151, %v272
    %v274 = vpop.f32.mrb[0].mxu0
    %v275 = vadd.f32 %v155, %v274
    %276 = vmatprep.mubr.f32.mxu0 0.0
    %277 = vmatmul.mubr.f32.gmra.mrb[0].mxu0 %v91
    %v278 = vpop.f32.mrb[0].mxu0
    %v279 = vadd.f32 %v151, %v278
    %v280 = vpop.f32.mrb[0].mxu0
    %v281 = vadd.f32 %v155, %v280
    %282 = vmatprep.mubr.f32.mxu0 0.0
    %283 = vmatmul.mubr.f32.gmra.mrb[0].mxu0 %v92
    %v284 = vpop.f32.mrb[0].mxu0
    %v285 = vadd.f32 %v151, %v284
    %v286 = vpop.f32.mrb[0].mxu0
    %v287 = vadd.f32 %v155, %v286
    %288 = vmatprep.mubr.f32.mxu0 0.0
    %289 = vmatmul.mubr.f32.gmra.mrb[0].mxu0 %v93
    %v290 = vpop.f32.mrb[0].mxu0
    %v291 = vadd.f32 %v151, %v290
    %v292 = vpop.f32.mrb[0].mxu0
    %v293 = vadd.f32 %v155, %v292
    %294 = vmatprep.mubr.f32.mxu0 0.0
    %295 = vmatmul.mubr.f32.gmra.mrb[0].mxu0 %v94
    %v296 = vpop.f32.mrb[0].mxu0
    %v297 = vadd.f32 %v151, %v296
    %v298 = vpop.f32.mrb[0].mxu0
    %v299 = vadd.f32 %v155, %v298
    %300 = vmatprep.mubr.f32.mxu0 0.0
    %301 = vmatmul.mubr.f32.gmra.mrb[0].mxu0 %v95
    %v302 = vpop.f32.mrb[0].mxu0
    %v303 = vadd.f32 %v151, %v302
    %v304 = vpop.f32.mrb[0].mxu0
    %v305 = vadd.f32 %v155, %v304
    %306 = vmatprep.mubr.f32.mxu0 0.0
    %307 = vmatmul.mubr.f32.gmra.mrb[0].mxu0 %v96
    %v308 = vpop.f32.mrb[0].mxu0
    %v309 = vadd.f32 %v151, %v308
    %v310 = vpop.f32.mrb[0].mxu0
    %v311 = vadd.f32 %v155, %v310
    %312 = vmatprep.mubr.f32.mxu0 0.0
    %313 = vmatmul.mubr.f32.gmra.mrb[0].mxu0 %v97
    %v314 = vpop.f32.mrb[0].mxu0
    %v315 = vadd.f32 %v151, %v314
    %v316 = vpop.f32.mrb[0].mxu0
    %v317 = vadd.f32 %v155, %v316
    %318 = vmatprep.mubr.f32.mxu0 0.0
    %319 = vmatmul.mubr.f32.gmra.mrb[0].mxu0 %v98
    %v320 = vpop.f32.mrb[0].mxu0
    %v321 = vadd.f32 %v151, %v320
    %v322 = vpop.f32.mrb[0].mxu0
    %v323 = vadd.f32 %v155, %v322
    %324 = vmatprep.mubr.f32.mxu0 0.0
    %325 = vmatmul.mubr.f32.gmra.mrb[0].mxu0 %v99
    %v326 = vpop.f32.mrb[0].mxu0
    %v327 = vadd.f32 %v151, %v326
    %v328 = vpop.f32.mrb[0].mxu0
    %v329 = vadd.f32 %v155, %v328
    %330 = vmatprep.mubr.f32.mxu0 0.0
    %331 = vmatmul.mubr.f32.gmra.mrb[0].mxu0 %v100
    %v332 = vpop.f32.mrb[0].mxu0
    %v333 = vadd.f32 %v151, %v332
    %v334 = vpop.f32.mrb[0].mxu0
    %v335 = vadd.f32 %v155, %v334
    %336 = vmatprep.mubr.f32.mxu0 0.0
    %337 = vmatmul.mubr.f32.gmra.mrb[0].mxu0 %v101
    %v338 = vpop.f32.mrb[0].mxu0
    %v339 = vadd.f32 %v151, %v338
    %v340 = vpop.f32.mrb[0].mxu0
    %v341 = vadd.f32 %v155, %v340
    %342 = vmatprep.mubr.f32.mxu0 0.0
    %343 = vmatmul.mubr.f32.gmra.mrb[0].mxu0 %v102
    %v344 = vpop.f32.mrb[0].mxu0
    %v345 = vadd.f32 %v151, %v344
    %v346 = vpop.f32.mrb[0].mxu0
    %v347 = vadd.f32 %v155, %v346
    %348 = vmatprep.mubr.f32.mxu0 0.0
    %349 = vmatmul.mubr.f32.gmra.mrb[0].mxu0 %v103
    %v350 = vpop.f32.mrb[0].mxu0
    %v351 = vadd.f32 %v151, %v350
    %v352 = vpop.f32.mrb[0].mxu0
    %v353 = vadd.f32 %v155, %v352
    %354 = vmatprep.mubr.f32.mxu0 0.0
    %355 = vmatmul.mubr.f32.gmra.mrb[0].mxu0 %v104
    %v356 = vpop.f32.mrb[0].mxu0
    %v357 = vadd.f32 %v151, %v356
    %v358 = vpop.f32.mrb[0].mxu0
    %v359 = vadd.f32 %v155, %v358
    %360 = vmatprep.mubr.f32.mxu0 0.0
    %361 = vmatmul.mubr.f32.gmra.mrb[0].mxu0 %v105
    %v362 = vpop.f32.mrb[0].mxu0
    %v363 = vadd.f32 %v151, %v362
    %v364 = vpop.f32.mrb[0].mxu0
    %v365 = vadd.f32 %v155, %v364
    %366 = vmatprep.mubr.f32.mxu0 0.0
    %367 = vmatmul.mubr.f32.gmra.mrb[0].mxu0 %v106
    %v368 = vpop.f32.mrb[0].mxu0
    %v369 = vadd.f32 %v151, %v368
    %v370 = vpop.f32.mrb[0].mxu0
    %v371 = vadd.f32 %v155, %v370
    %372 = vmatprep.mubr.f32.mxu0 0.0
    %373 = vmatmul.mubr.f32.gmra.mrb[0].mxu0 %v107
    %v374 = vpop.f32.mrb[0].mxu0
    %v375 = vadd.f32 %v151, %v374
    %v376 = vpop.f32.mrb[0].mxu0
    %v377 = vadd.f32 %v155, %v376
    %378 = vmatprep.mubr.f32.mxu0 0.0
    %379 = vmatmul.mubr.f32.gmra.mrb[0].mxu0 %v108
    %v380 = vpop.f32.mrb[0].mxu0
    %v381 = vadd.f32 %v151, %v380
    %v382 = vpop.f32.mrb[0].mxu0
    %v383 = vadd.f32 %v155, %v382
    %384 = vmatprep.mubr.f32.mxu0 0.0
    %385 = vmatmul.mubr.f32.gmra.mrb[0].mxu0 %v109
    %v386 = vpop.f32.mrb[0].mxu0
    %v387 = vadd.f32 %v151, %v386
    %v388 = vpop.f32.mrb[0].mxu0
    %v389 = vadd.f32 %v155, %v388
    %390 = vmatprep.mubr.f32.mxu0 0.0
    %391 = vmatmul.mubr.f32.gmra.mrb[0].mxu0 %v110
    %v392 = vpop.f32.mrb[0].mxu0
    %v393 = vadd.f32 %v151, %v392
    %v394 = vpop.f32.mrb[0].mxu0
    %v395 = vadd.f32 %v155, %v394
    %396 = vmatprep.mubr.f32.mxu0 0.0
    %397 = vmatmul.mubr.f32.gmra.mrb[0].mxu0 %v111
    %v398 = vpop.f32.mrb[0].mxu0
    %v399 = vadd.f32 %v151, %v398
    %v400 = vpop.f32.mrb[0].mxu0
    %v401 = vadd.f32 %v155, %v400
    %402 = vmatprep.mubr.f32.mxu0 0.0
    %403 = vmatmul.mubr.f32.gmra.mrb[0].mxu0 %v112
    %v404 = vpop.f32.mrb[0].mxu0
    %v405 = vadd.f32 %v151, %v404
    %v406 = vpop.f32.mrb[0].mxu0
    %v407 = vadd.f32 %v155, %v406
    %408 = vmatprep.mubr.f32.mxu0 0.0
    %409 = vmatmul.mubr.f32.gmra.mrb[0].mxu0 %v113
    %v410 = vpop.f32.mrb[0].mxu0
    %v411 = vadd.f32 %v151, %v410
    %v412 = vpop.f32.mrb[0].mxu0
    %v413 = vadd.f32 %v155, %v412
    %414 = vdwg.mxu0
    %v415 = vmax.f32 %v225, 0.0
    %v416 = vmax.f32 %v231, 0.0
    %v417 = vmax.f32 %v237, 0.0
    %v418 = vmax.f32 %v243, 0.0
    %v419 = vmax.f32 %v249, 0.0
    %v420 = vmax.f32 %v255, 0.0
    %v421 = vmax.f32 %v261, 0.0
    %v422 = vmax.f32 %v267, 0.0
    %v423 = vmax.f32 %v273, 0.0
    %v424 = vmax.f32 %v279, 0.0
    %v425 = vmax.f32 %v285, 0.0
    %v426 = vmax.f32 %v291, 0.0
    %v427 = vmax.f32 %v297, 0.0
    %v428 = vmax.f32 %v303, 0.0
    %v429 = vmax.f32 %v309, 0.0
    %v430 = vmax.f32 %v315, 0.0
    %v431 = vmax.f32 %v321, 0.0
    %v432 = vmax.f32 %v327, 0.0
    %v433 = vmax.f32 %v333, 0.0
    %v434 = vmax.f32 %v339, 0.0
    %v435 = vmax.f32 %v345, 0.0
    %v436 = vmax.f32 %v351, 0.0
    %v437 = vmax.f32 %v357, 0.0
    %v438 = vmax.f32 %v363, 0.0
    %v439 = vmax.f32 %v369, 0.0
    %v440 = vmax.f32 %v375, 0.0
    %v441 = vmax.f32 %v381, 0.0
    %v442 = vmax.f32 %v387, 0.0
    %v443 = vmax.f32 %v393, 0.0
    %v444 = vmax.f32 %v399, 0.0
    %v445 = vmax.f32 %v405, 0.0
    %v446 = vmax.f32 %v411, 0.0
    %v447 = vld [vmem:[#allocation7] sm:$0xff]
    %v448 = vld [vmem:[#allocation7 + $0x8] sm:$0xff]
    %v449 = vld [vmem:[#allocation7 + $0x10] sm:$0xff]
    %v450 = vld [vmem:[#allocation7 + $0x18] sm:$0xff]
    %v451 = vld [vmem:[#allocation7 + $0x20] sm:$0xff]
    %v452 = vld [vmem:[#allocation7 + $0x28] sm:$0xff]
    %v453 = vld [vmem:[#allocation7 + $0x30] sm:$0xff]
    %v454 = vld [vmem:[#allocation7 + $0x38] sm:$0xff]
    %v455 = vld [vmem:[#allocation7 + $0x40] sm:$0xff]
    %v456 = vld [vmem:[#allocation7 + $0x48] sm:$0xff]
    %v457 = vld [vmem:[#allocation7 + $0x50] sm:$0xff]
    %v458 = vld [vmem:[#allocation7 + $0x58] sm:$0xff]
    %v459 = vld [vmem:[#allocation7 + $0x60] sm:$0xff]
    %v460 = vld [vmem:[#allocation7 + $0x68] sm:$0xff]
    %v461 = vld [vmem:[#allocation7 + $0x70] sm:$0xff]
    %v462 = vld [vmem:[#allocation7 + $0x78] sm:$0xff]
    %v463 = vld [vmem:[%s4] sm:$0x1]
    %v465 = vlaneseq
    %v466 = vshrl.u32 %v465, 7
    %v467 = vsub.s32 0, %v466
    %v468 = vrot.slane %v463, %v467
    %470 = vmatprep.subr.mxu0 0.0
    %471 = vmatpush1.msra.mxu0 %v447
    %472 = vmatprep.subr.mxu0 0.0
    %473 = vmatpush1.msra.mxu0 %v448
    %474 = vmatprep.subr.mxu0 0.0
    %475 = vmatpush1.msra.mxu0 %v449
    %476 = vmatprep.subr.mxu0 0.0
    %477 = vmatpush1.msra.mxu0 %v450
    %478 = vmatprep.subr.mxu0 0.0
    %479 = vmatpush1.msra.mxu0 %v451
    %480 = vmatprep.subr.mxu0 0.0
    %481 = vmatpush1.msra.mxu0 %v452
    %482 = vmatprep.subr.mxu0 0.0
    %483 = vmatpush1.msra.mxu0 %v453
    %484 = vmatprep.subr.mxu0 0.0
    %485 = vmatpush1.msra.mxu0 %v454
    %486 = vmatprep.subr.mxu0 0.0
    %487 = vmatpush1.msra.mxu0 %v455
    %488 = vmatprep.subr.mxu0 0.0
    %489 = vmatpush1.msra.mxu0 %v456
    %490 = vmatprep.subr.mxu0 0.0
    %491 = vmatpush1.msra.mxu0 %v457
    %492 = vmatprep.subr.mxu0 0.0
    %493 = vmatpush1.msra.mxu0 %v458
    %494 = vmatprep.subr.mxu0 0.0
    %495 = vmatpush1.msra.mxu0 %v459
    %496 = vmatprep.subr.mxu0 0.0
    %497 = vmatpush1.msra.mxu0 %v460
    %498 = vmatprep.subr.mxu0 0.0
    %499 = vmatpush1.msra.mxu0 %v461
    %500 = vmatprep.subr.mxu0 0.0
    %501 = vmatpush1.msra.mxu0 %v462
    %502 = vmatprep.subr.mxu0 0.0
    %503 = vmatpush1.msra.mxu0 0.0
    %504 = vmatprep.subr.mxu0 0.0
    %505 = vmatpush1.msra.mxu0 0.0
    %506 = vmatprep.subr.mxu0 0.0
    %507 = vmatpush1.msra.mxu0 0.0
    %508 = vmatprep.subr.mxu0 0.0
    %509 = vmatpush1.msra.mxu0 0.0
    %510 = vmatprep.subr.mxu0 0.0
    %511 = vmatpush1.msra.mxu0 0.0
    %512 = vmatprep.subr.mxu0 0.0
    %513 = vmatpush1.msra.mxu0 0.0
    %514 = vmatprep.subr.mxu0 0.0
    %515 = vmatpush1.msra.mxu0 0.0
    %516 = vmatprep.subr.mxu0 0.0
    %517 = vmatpush1.msra.mxu0 0.0
    %518 = vmatprep.subr.mxu0 0.0
    %519 = vmatpush1.msra.mxu0 0.0
    %520 = vmatprep.subr.mxu0 0.0
    %521 = vmatpush1.msra.mxu0 0.0
    %522 = vmatprep.subr.mxu0 0.0
    %523 = vmatpush1.msra.mxu0 0.0
    %524 = vmatprep.subr.mxu0 0.0
    %525 = vmatpush1.msra.mxu0 0.0
    %526 = vmatprep.subr.mxu0 0.0
    %527 = vmatpush1.msra.mxu0 0.0
    %528 = vmatprep.subr.mxu0 0.0
    %529 = vmatpush1.msra.mxu0 0.0
    %530 = vmatprep.subr.mxu0 0.0
    %531 = vmatpush1.msra.mxu0 0.0
    %532 = vmatprep.subr.mxu0 0.0
    %533 = vmatpush1.msra.mxu0 0.0
    %534 = vmatprep.mubr.f32.mxu0 0.0
    %535 = vmatmul.mubr.f32.gmra.mrb[0].mxu0 %v415
    %v536 = vpop.f32.mrb[0].mxu0
    %v537 = vadd.f32 %v468, %v536
    %v538 = vpop.f32.mrb[0].mxu0
    %539 = vmatprep.mubr.f32.mxu0 0.0
    %540 = vmatmul.mubr.f32.gmra.mrb[0].mxu0 %v416
    %v541 = vpop.f32.mrb[0].mxu0
    %v542 = vadd.f32 %v468, %v541
    %v543 = vpop.f32.mrb[0].mxu0
    %544 = vmatprep.mubr.f32.mxu0 0.0
    %545 = vmatmul.mubr.f32.gmra.mrb[0].mxu0 %v417
    %v546 = vpop.f32.mrb[0].mxu0
    %v547 = vadd.f32 %v468, %v546
    %v548 = vpop.f32.mrb[0].mxu0
    %549 = vmatprep.mubr.f32.mxu0 0.0
    %550 = vmatmul.mubr.f32.gmra.mrb[0].mxu0 %v418
    %v551 = vpop.f32.mrb[0].mxu0
    %v552 = vadd.f32 %v468, %v551
    %v553 = vpop.f32.mrb[0].mxu0
    %554 = vmatprep.mubr.f32.mxu0 0.0
    %555 = vmatmul.mubr.f32.gmra.mrb[0].mxu0 %v419
    %v556 = vpop.f32.mrb[0].mxu0
    %v557 = vadd.f32 %v468, %v556
    %v558 = vpop.f32.mrb[0].mxu0
    %559 = vmatprep.mubr.f32.mxu0 0.0
    %560 = vmatmul.mubr.f32.gmra.mrb[0].mxu0 %v420
    %v561 = vpop.f32.mrb[0].mxu0
    %v562 = vadd.f32 %v468, %v561
    %v563 = vpop.f32.mrb[0].mxu0
    %564 = vmatprep.mubr.f32.mxu0 0.0
    %565 = vmatmul.mubr.f32.gmra.mrb[0].mxu0 %v421
    %v566 = vpop.f32.mrb[0].mxu0
    %v567 = vadd.f32 %v468, %v566
    %v568 = vpop.f32.mrb[0].mxu0
    %569 = vmatprep.mubr.f32.mxu0 0.0
    %570 = vmatmul.mubr.f32.gmra.mrb[0].mxu0 %v422
    %v571 = vpop.f32.mrb[0].mxu0
    %v572 = vadd.f32 %v468, %v571
    %v573 = vpop.f32.mrb[0].mxu0
    %574 = vmatprep.mubr.f32.mxu0 0.0
    %575 = vmatmul.mubr.f32.gmra.mrb[0].mxu0 %v423
    %v576 = vpop.f32.mrb[0].mxu0
    %v577 = vadd.f32 %v468, %v576
    %v578 = vpop.f32.mrb[0].mxu0
    %579 = vmatprep.mubr.f32.mxu0 0.0
    %580 = vmatmul.mubr.f32.gmra.mrb[0].mxu0 %v424
    %v581 = vpop.f32.mrb[0].mxu0
    %v582 = vadd.f32 %v468, %v581
    %v583 = vpop.f32.mrb[0].mxu0
    %584 = vmatprep.mubr.f32.mxu0 0.0
    %585 = vmatmul.mubr.f32.gmra.mrb[0].mxu0 %v425
    %v586 = vpop.f32.mrb[0].mxu0
    %v587 = vadd.f32 %v468, %v586
    %v588 = vpop.f32.mrb[0].mxu0
    %589 = vmatprep.mubr.f32.mxu0 0.0
    %590 = vmatmul.mubr.f32.gmra.mrb[0].mxu0 %v426
    %v591 = vpop.f32.mrb[0].mxu0
    %v592 = vadd.f32 %v468, %v591
    %v593 = vpop.f32.mrb[0].mxu0
    %594 = vmatprep.mubr.f32.mxu0 0.0
    %595 = vmatmul.mubr.f32.gmra.mrb[0].mxu0 %v427
    %v596 = vpop.f32.mrb[0].mxu0
    %v597 = vadd.f32 %v468, %v596
    %v598 = vpop.f32.mrb[0].mxu0
    %599 = vmatprep.mubr.f32.mxu0 0.0
    %600 = vmatmul.mubr.f32.gmra.mrb[0].mxu0 %v428
    %v601 = vpop.f32.mrb[0].mxu0
    %v602 = vadd.f32 %v468, %v601
    %v603 = vpop.f32.mrb[0].mxu0
    %604 = vmatprep.mubr.f32.mxu0 0.0
    %605 = vmatmul.mubr.f32.gmra.mrb[0].mxu0 %v429
    %v606 = vpop.f32.mrb[0].mxu0
    %v607 = vadd.f32 %v468, %v606
    %v608 = vpop.f32.mrb[0].mxu0
    %609 = vmatprep.mubr.f32.mxu0 0.0
    %610 = vmatmul.mubr.f32.gmra.mrb[0].mxu0 %v430
    %v611 = vpop.f32.mrb[0].mxu0
    %v612 = vadd.f32 %v468, %v611
    %v613 = vpop.f32.mrb[0].mxu0
    %614 = vmatprep.mubr.f32.mxu0 0.0
    %615 = vmatmul.mubr.f32.gmra.mrb[0].mxu0 %v431
    %v616 = vpop.f32.mrb[0].mxu0
    %v617 = vadd.f32 %v468, %v616
    %v618 = vpop.f32.mrb[0].mxu0
    %619 = vmatprep.mubr.f32.mxu0 0.0
    %620 = vmatmul.mubr.f32.gmra.mrb[0].mxu0 %v432
    %v621 = vpop.f32.mrb[0].mxu0
    %v622 = vadd.f32 %v468, %v621
    %v623 = vpop.f32.mrb[0].mxu0
    %624 = vmatprep.mubr.f32.mxu0 0.0
    %625 = vmatmul.mubr.f32.gmra.mrb[0].mxu0 %v433
    %v626 = vpop.f32.mrb[0].mxu0
    %v627 = vadd.f32 %v468, %v626
    %v628 = vpop.f32.mrb[0].mxu0
    %629 = vmatprep.mubr.f32.mxu0 0.0
    %630 = vmatmul.mubr.f32.gmra.mrb[0].mxu0 %v434
    %v631 = vpop.f32.mrb[0].mxu0
    %v632 = vadd.f32 %v468, %v631
    %v633 = vpop.f32.mrb[0].mxu0
    %634 = vmatprep.mubr.f32.mxu0 0.0
    %635 = vmatmul.mubr.f32.gmra.mrb[0].mxu0 %v435
    %v636 = vpop.f32.mrb[0].mxu0
    %v637 = vadd.f32 %v468, %v636
    %v638 = vpop.f32.mrb[0].mxu0
    %639 = vmatprep.mubr.f32.mxu0 0.0
    %640 = vmatmul.mubr.f32.gmra.mrb[0].mxu0 %v436
    %v641 = vpop.f32.mrb[0].mxu0
    %v642 = vadd.f32 %v468, %v641
    %v643 = vpop.f32.mrb[0].mxu0
    %644 = vmatprep.mubr.f32.mxu0 0.0
    %645 = vmatmul.mubr.f32.gmra.mrb[0].mxu0 %v437
    %v646 = vpop.f32.mrb[0].mxu0
    %v647 = vadd.f32 %v468, %v646
    %v648 = vpop.f32.mrb[0].mxu0
    %649 = vmatprep.mubr.f32.mxu0 0.0
    %650 = vmatmul.mubr.f32.gmra.mrb[0].mxu0 %v438
    %v651 = vpop.f32.mrb[0].mxu0
    %v652 = vadd.f32 %v468, %v651
    %v653 = vpop.f32.mrb[0].mxu0
    %654 = vmatprep.mubr.f32.mxu0 0.0
    %655 = vmatmul.mubr.f32.gmra.mrb[0].mxu0 %v439
    %v656 = vpop.f32.mrb[0].mxu0
    %v657 = vadd.f32 %v468, %v656
    %v658 = vpop.f32.mrb[0].mxu0
    %659 = vmatprep.mubr.f32.mxu0 0.0
    %660 = vmatmul.mubr.f32.gmra.mrb[0].mxu0 %v440
    %v661 = vpop.f32.mrb[0].mxu0
    %v662 = vadd.f32 %v468, %v661
    %v663 = vpop.f32.mrb[0].mxu0
    %664 = vmatprep.mubr.f32.mxu0 0.0
    %665 = vmatmul.mubr.f32.gmra.mrb[0].mxu0 %v441
    %v666 = vpop.f32.mrb[0].mxu0
    %v667 = vadd.f32 %v468, %v666
    %v668 = vpop.f32.mrb[0].mxu0
    %669 = vmatprep.mubr.f32.mxu0 0.0
    %670 = vmatmul.mubr.f32.gmra.mrb[0].mxu0 %v442
    %v671 = vpop.f32.mrb[0].mxu0
    %v672 = vadd.f32 %v468, %v671
    %v673 = vpop.f32.mrb[0].mxu0
    %674 = vmatprep.mubr.f32.mxu0 0.0
    %675 = vmatmul.mubr.f32.gmra.mrb[0].mxu0 %v443
    %v676 = vpop.f32.mrb[0].mxu0
    %v677 = vadd.f32 %v468, %v676
    %v678 = vpop.f32.mrb[0].mxu0
    %679 = vmatprep.mubr.f32.mxu0 0.0
    %680 = vmatmul.mubr.f32.gmra.mrb[0].mxu0 %v444
    %v681 = vpop.f32.mrb[0].mxu0
    %v682 = vadd.f32 %v468, %v681
    %v683 = vpop.f32.mrb[0].mxu0
    %684 = vmatprep.mubr.f32.mxu0 0.0
    %685 = vmatmul.mubr.f32.gmra.mrb[0].mxu0 %v445
    %v686 = vpop.f32.mrb[0].mxu0
    %v687 = vadd.f32 %v468, %v686
    %v688 = vpop.f32.mrb[0].mxu0
    %689 = vmatprep.mubr.f32.mxu0 0.0
    %690 = vmatmul.mubr.f32.gmra.mrb[0].mxu0 %v446
    %v691 = vpop.f32.mrb[0].mxu0
    %v692 = vadd.f32 %v468, %v691
    %v693 = vpop.f32.mrb[0].mxu0
    %694 = vdwg.mxu0
    %v695 = vmax.f32 %v537, 0.0
    %v696 = vmax.f32 %v542, 0.0
    %v697 = vmax.f32 %v547, 0.0
    %v698 = vmax.f32 %v552, 0.0
    %v699 = vmax.f32 %v557, 0.0
    %v700 = vmax.f32 %v562, 0.0
    %v701 = vmax.f32 %v567, 0.0
    %v702 = vmax.f32 %v572, 0.0
    %v703 = vmax.f32 %v577, 0.0
    %v704 = vmax.f32 %v582, 0.0
    %v705 = vmax.f32 %v587, 0.0
    %v706 = vmax.f32 %v592, 0.0
    %v707 = vmax.f32 %v597, 0.0
    %v708 = vmax.f32 %v602, 0.0
    %v709 = vmax.f32 %v607, 0.0
    %v710 = vmax.f32 %v612, 0.0
    %v711 = vmax.f32 %v617, 0.0
    %v712 = vmax.f32 %v622, 0.0
    %v713 = vmax.f32 %v627, 0.0
    %v714 = vmax.f32 %v632, 0.0
    %v715 = vmax.f32 %v637, 0.0
    %v716 = vmax.f32 %v642, 0.0
    %v717 = vmax.f32 %v647, 0.0
    %v718 = vmax.f32 %v652, 0.0
    %v719 = vmax.f32 %v657, 0.0
    %v720 = vmax.f32 %v662, 0.0
    %v721 = vmax.f32 %v667, 0.0
    %v722 = vmax.f32 %v672, 0.0
    %v723 = vmax.f32 %v677, 0.0
    %v724 = vmax.f32 %v682, 0.0
    %v725 = vmax.f32 %v687, 0.0
    %v726 = vmax.f32 %v692, 0.0
    %v727 = vld [vmem:[#allocation8] sm:$0xff]
    %v728 = vld [vmem:[#allocation8 + $0x8] sm:$0xff]
    %v729 = vld [vmem:[#allocation8 + $0x10] sm:$0xff]
    %v730 = vld [vmem:[#allocation8 + $0x18] sm:$0xff]
    %v731 = vld [vmem:[#allocation8 + $0x20] sm:$0xff]
    %v732 = vld [vmem:[#allocation8 + $0x28] sm:$0xff]
    %v733 = vld [vmem:[#allocation8 + $0x30] sm:$0xff]
    %v734 = vld [vmem:[#allocation8 + $0x38] sm:$0xff]
    %v735 = vld [vmem:[#allocation8 + $0x40] sm:$0xff]
    %v736 = vld [vmem:[#allocation8 + $0x48] sm:$0xff]
    %v737 = vld [vmem:[#allocation8 + $0x50] sm:$0xff]
    %v738 = vld [vmem:[#allocation8 + $0x58] sm:$0xff]
    %v739 = vld [vmem:[#allocation8 + $0x60] sm:$0xff]
    %v740 = vld [vmem:[#allocation8 + $0x68] sm:$0xff]
    %v741 = vld [vmem:[#allocation8 + $0x70] sm:$0xff]
    %v742 = vld [vmem:[#allocation8 + $0x78] sm:$0xff]
    %v743 = vld [vmem:[%s6] sm:$0x1]
    %v745 = vlaneseq
    %v746 = vshrl.u32 %v745, 7
    %v747 = vsub.s32 0, %v746
    %v748 = vrot.slane %v743, %v747
    %750 = vmatprep.subr.mxu0 0.0
    %751 = vmatpush1.msra.mxu0 %v727
    %752 = vmatprep.subr.mxu0 0.0
    %753 = vmatpush1.msra.mxu0 %v728
    %754 = vmatprep.subr.mxu0 0.0
    %755 = vmatpush1.msra.mxu0 %v729
    %756 = vmatprep.subr.mxu0 0.0
    %757 = vmatpush1.msra.mxu0 %v730
    %758 = vmatprep.subr.mxu0 0.0
    %759 = vmatpush1.msra.mxu0 %v731
    %760 = vmatprep.subr.mxu0 0.0
    %761 = vmatpush1.msra.mxu0 %v732
    %762 = vmatprep.subr.mxu0 0.0
    %763 = vmatpush1.msra.mxu0 %v733
    %764 = vmatprep.subr.mxu0 0.0
    %765 = vmatpush1.msra.mxu0 %v734
    %766 = vmatprep.subr.mxu0 0.0
    %767 = vmatpush1.msra.mxu0 %v735
    %768 = vmatprep.subr.mxu0 0.0
    %769 = vmatpush1.msra.mxu0 %v736
    %770 = vmatprep.subr.mxu0 0.0
    %771 = vmatpush1.msra.mxu0 %v737
    %772 = vmatprep.subr.mxu0 0.0
    %773 = vmatpush1.msra.mxu0 %v738
    %774 = vmatprep.subr.mxu0 0.0
    %775 = vmatpush1.msra.mxu0 %v739
    %776 = vmatprep.subr.mxu0 0.0
    %777 = vmatpush1.msra.mxu0 %v740
    %778 = vmatprep.subr.mxu0 0.0
    %779 = vmatpush1.msra.mxu0 %v741
    %780 = vmatprep.subr.mxu0 0.0
    %781 = vmatpush1.msra.mxu0 %v742
    %782 = vmatprep.subr.mxu0 0.0
    %783 = vmatpush1.msra.mxu0 0.0
    %784 = vmatprep.subr.mxu0 0.0
    %785 = vmatpush1.msra.mxu0 0.0
    %786 = vmatprep.subr.mxu0 0.0
    %787 = vmatpush1.msra.mxu0 0.0
    %788 = vmatprep.subr.mxu0 0.0
    %789 = vmatpush1.msra.mxu0 0.0
    %790 = vmatprep.subr.mxu0 0.0
    %791 = vmatpush1.msra.mxu0 0.0
    %792 = vmatprep.subr.mxu0 0.0
    %793 = vmatpush1.msra.mxu0 0.0
    %794 = vmatprep.subr.mxu0 0.0
    %795 = vmatpush1.msra.mxu0 0.0
    %796 = vmatprep.subr.mxu0 0.0
    %797 = vmatpush1.msra.mxu0 0.0
    %798 = vmatprep.subr.mxu0 0.0
    %799 = vmatpush1.msra.mxu0 0.0
    %800 = vmatprep.subr.mxu0 0.0
    %801 = vmatpush1.msra.mxu0 0.0
    %802 = vmatprep.subr.mxu0 0.0
    %803 = vmatpush1.msra.mxu0 0.0
    %804 = vmatprep.subr.mxu0 0.0
    %805 = vmatpush1.msra.mxu0 0.0
    %806 = vmatprep.subr.mxu0 0.0
    %807 = vmatpush1.msra.mxu0 0.0
    %808 = vmatprep.subr.mxu0 0.0
    %809 = vmatpush1.msra.mxu0 0.0
    %810 = vmatprep.subr.mxu0 0.0
    %811 = vmatpush1.msra.mxu0 0.0
    %812 = vmatprep.subr.mxu0 0.0
    %813 = vmatpush1.msra.mxu0 0.0
    %814 = vmatprep.mubr.f32.mxu0 0.0
    %815 = vmatmul.mubr.f32.gmra.mrb[0].mxu0 %v695
    %v816 = vpop.f32.mrb[0].mxu0
    %v817 = vadd.f32 %v748, %v816
    %v818 = vpop.f32.mrb[0].mxu0
    %819 = vmatprep.mubr.f32.mxu0 0.0
    %820 = vmatmul.mubr.f32.gmra.mrb[0].mxu0 %v696
    %v821 = vpop.f32.mrb[0].mxu0
    %v822 = vadd.f32 %v748, %v821
    %v823 = vpop.f32.mrb[0].mxu0
    %824 = vmatprep.mubr.f32.mxu0 0.0
    %825 = vmatmul.mubr.f32.gmra.mrb[0].mxu0 %v697
    %v826 = vpop.f32.mrb[0].mxu0
    %v827 = vadd.f32 %v748, %v826
    %v828 = vpop.f32.mrb[0].mxu0
    %829 = vmatprep.mubr.f32.mxu0 0.0
    %830 = vmatmul.mubr.f32.gmra.mrb[0].mxu0 %v698
    %v831 = vpop.f32.mrb[0].mxu0
    %v832 = vadd.f32 %v748, %v831
    %v833 = vpop.f32.mrb[0].mxu0
    %834 = vmatprep.mubr.f32.mxu0 0.0
    %835 = vmatmul.mubr.f32.gmra.mrb[0].mxu0 %v699
    %v836 = vpop.f32.mrb[0].mxu0
    %v837 = vadd.f32 %v748, %v836
    %v838 = vpop.f32.mrb[0].mxu0
    %839 = vmatprep.mubr.f32.mxu0 0.0
    %840 = vmatmul.mubr.f32.gmra.mrb[0].mxu0 %v700
    %v841 = vpop.f32.mrb[0].mxu0
    %v842 = vadd.f32 %v748, %v841
    %v843 = vpop.f32.mrb[0].mxu0
    %844 = vmatprep.mubr.f32.mxu0 0.0
    %845 = vmatmul.mubr.f32.gmra.mrb[0].mxu0 %v701
    %v846 = vpop.f32.mrb[0].mxu0
    %v847 = vadd.f32 %v748, %v846
    %v848 = vpop.f32.mrb[0].mxu0
    %849 = vmatprep.mubr.f32.mxu0 0.0
    %850 = vmatmul.mubr.f32.gmra.mrb[0].mxu0 %v702
    %v851 = vpop.f32.mrb[0].mxu0
    %v852 = vadd.f32 %v748, %v851
    %v853 = vpop.f32.mrb[0].mxu0
    %854 = vmatprep.mubr.f32.mxu0 0.0
    %855 = vmatmul.mubr.f32.gmra.mrb[0].mxu0 %v703
    %v856 = vpop.f32.mrb[0].mxu0
    %v857 = vadd.f32 %v748, %v856
    %v858 = vpop.f32.mrb[0].mxu0
    %859 = vmatprep.mubr.f32.mxu0 0.0
    %860 = vmatmul.mubr.f32.gmra.mrb[0].mxu0 %v704
    %v861 = vpop.f32.mrb[0].mxu0
    %v862 = vadd.f32 %v748, %v861
    %v863 = vpop.f32.mrb[0].mxu0
    %864 = vmatprep.mubr.f32.mxu0 0.0
    %865 = vmatmul.mubr.f32.gmra.mrb[0].mxu0 %v705
    %v866 = vpop.f32.mrb[0].mxu0
    %v867 = vadd.f32 %v748, %v866
    %v868 = vpop.f32.mrb[0].mxu0
    %869 = vmatprep.mubr.f32.mxu0 0.0
    %870 = vmatmul.mubr.f32.gmra.mrb[0].mxu0 %v706
    %v871 = vpop.f32.mrb[0].mxu0
    %v872 = vadd.f32 %v748, %v871
    %v873 = vpop.f32.mrb[0].mxu0
    %874 = vmatprep.mubr.f32.mxu0 0.0
    %875 = vmatmul.mubr.f32.gmra.mrb[0].mxu0 %v707
    %v876 = vpop.f32.mrb[0].mxu0
    %v877 = vadd.f32 %v748, %v876
    %v878 = vpop.f32.mrb[0].mxu0
    %879 = vmatprep.mubr.f32.mxu0 0.0
    %880 = vmatmul.mubr.f32.gmra.mrb[0].mxu0 %v708
    %v881 = vpop.f32.mrb[0].mxu0
    %v882 = vadd.f32 %v748, %v881
    %v883 = vpop.f32.mrb[0].mxu0
    %884 = vmatprep.mubr.f32.mxu0 0.0
    %885 = vmatmul.mubr.f32.gmra.mrb[0].mxu0 %v709
    %v886 = vpop.f32.mrb[0].mxu0
    %v887 = vadd.f32 %v748, %v886
    %v888 = vpop.f32.mrb[0].mxu0
    %889 = vmatprep.mubr.f32.mxu0 0.0
    %890 = vmatmul.mubr.f32.gmra.mrb[0].mxu0 %v710
    %v891 = vpop.f32.mrb[0].mxu0
    %v892 = vadd.f32 %v748, %v891
    %v893 = vpop.f32.mrb[0].mxu0
    %894 = vmatprep.mubr.f32.mxu0 0.0
    %895 = vmatmul.mubr.f32.gmra.mrb[0].mxu0 %v711
    %v896 = vpop.f32.mrb[0].mxu0
    %v897 = vadd.f32 %v748, %v896
    %v898 = vpop.f32.mrb[0].mxu0
    %899 = vmatprep.mubr.f32.mxu0 0.0
    %900 = vmatmul.mubr.f32.gmra.mrb[0].mxu0 %v712
    %v901 = vpop.f32.mrb[0].mxu0
    %v902 = vadd.f32 %v748, %v901
    %v903 = vpop.f32.mrb[0].mxu0
    %904 = vmatprep.mubr.f32.mxu0 0.0
    %905 = vmatmul.mubr.f32.gmra.mrb[0].mxu0 %v713
    %v906 = vpop.f32.mrb[0].mxu0
    %v907 = vadd.f32 %v748, %v906
    %v908 = vpop.f32.mrb[0].mxu0
    %909 = vmatprep.mubr.f32.mxu0 0.0
    %910 = vmatmul.mubr.f32.gmra.mrb[0].mxu0 %v714
    %v911 = vpop.f32.mrb[0].mxu0
    %v912 = vadd.f32 %v748, %v911
    %v913 = vpop.f32.mrb[0].mxu0
    %914 = vmatprep.mubr.f32.mxu0 0.0
    %915 = vmatmul.mubr.f32.gmra.mrb[0].mxu0 %v715
    %v916 = vpop.f32.mrb[0].mxu0
    %v917 = vadd.f32 %v748, %v916
    %v918 = vpop.f32.mrb[0].mxu0
    %919 = vmatprep.mubr.f32.mxu0 0.0
    %920 = vmatmul.mubr.f32.gmra.mrb[0].mxu0 %v716
    %v921 = vpop.f32.mrb[0].mxu0
    %v922 = vadd.f32 %v748, %v921
    %v923 = vpop.f32.mrb[0].mxu0
    %924 = vmatprep.mubr.f32.mxu0 0.0
    %925 = vmatmul.mubr.f32.gmra.mrb[0].mxu0 %v717
    %v926 = vpop.f32.mrb[0].mxu0
    %v927 = vadd.f32 %v748, %v926
    %v928 = vpop.f32.mrb[0].mxu0
    %929 = vmatprep.mubr.f32.mxu0 0.0
    %930 = vmatmul.mubr.f32.gmra.mrb[0].mxu0 %v718
    %v931 = vpop.f32.mrb[0].mxu0
    %v932 = vadd.f32 %v748, %v931
    %v933 = vpop.f32.mrb[0].mxu0
    %934 = vmatprep.mubr.f32.mxu0 0.0
    %935 = vmatmul.mubr.f32.gmra.mrb[0].mxu0 %v719
    %v936 = vpop.f32.mrb[0].mxu0
    %v937 = vadd.f32 %v748, %v936
    %v938 = vpop.f32.mrb[0].mxu0
    %939 = vmatprep.mubr.f32.mxu0 0.0
    %940 = vmatmul.mubr.f32.gmra.mrb[0].mxu0 %v720
    %v941 = vpop.f32.mrb[0].mxu0
    %v942 = vadd.f32 %v748, %v941
    %v943 = vpop.f32.mrb[0].mxu0
    %944 = vmatprep.mubr.f32.mxu0 0.0
    %945 = vmatmul.mubr.f32.gmra.mrb[0].mxu0 %v721
    %v946 = vpop.f32.mrb[0].mxu0
    %v947 = vadd.f32 %v748, %v946
    %v948 = vpop.f32.mrb[0].mxu0
    %949 = vmatprep.mubr.f32.mxu0 0.0
    %950 = vmatmul.mubr.f32.gmra.mrb[0].mxu0 %v722
    %v951 = vpop.f32.mrb[0].mxu0
    %v952 = vadd.f32 %v748, %v951
    %v953 = vpop.f32.mrb[0].mxu0
    %954 = vmatprep.mubr.f32.mxu0 0.0
    %955 = vmatmul.mubr.f32.gmra.mrb[0].mxu0 %v723
    %v956 = vpop.f32.mrb[0].mxu0
    %v957 = vadd.f32 %v748, %v956
    %v958 = vpop.f32.mrb[0].mxu0
    %959 = vmatprep.mubr.f32.mxu0 0.0
    %960 = vmatmul.mubr.f32.gmra.mrb[0].mxu0 %v724
    %v961 = vpop.f32.mrb[0].mxu0
    %v962 = vadd.f32 %v748, %v961
    %v963 = vpop.f32.mrb[0].mxu0
    %964 = vmatprep.mubr.f32.mxu0 0.0
    %965 = vmatmul.mubr.f32.gmra.mrb[0].mxu0 %v725
    %v966 = vpop.f32.mrb[0].mxu0
    %v967 = vadd.f32 %v748, %v966
    %v968 = vpop.f32.mrb[0].mxu0
    %969 = vmatprep.mubr.f32.mxu0 0.0
    %970 = vmatmul.mubr.f32.gmra.mrb[0].mxu0 %v726
    %v971 = vpop.f32.mrb[0].mxu0
    %v972 = vadd.f32 %v748, %v971
    %v973 = vpop.f32.mrb[0].mxu0
    %974 = vdwg.mxu0
    %v975 = vadd.f32 %v817, %v227
    %v976 = vadd.f32 %v822, %v233
    %v977 = vadd.f32 %v827, %v239
    %v978 = vadd.f32 %v832, %v245
    %v979 = vadd.f32 %v837, %v251
    %v980 = vadd.f32 %v842, %v257
    %v981 = vadd.f32 %v847, %v263
    %v982 = vadd.f32 %v852, %v269
    %v983 = vadd.f32 %v857, %v275
    %v984 = vadd.f32 %v862, %v281
    %v985 = vadd.f32 %v867, %v287
    %v986 = vadd.f32 %v872, %v293
    %v987 = vadd.f32 %v877, %v299
    %v988 = vadd.f32 %v882, %v305
    %v989 = vadd.f32 %v887, %v311
    %v990 = vadd.f32 %v892, %v317
    %v991 = vadd.f32 %v897, %v323
    %v992 = vadd.f32 %v902, %v329
    %v993 = vadd.f32 %v907, %v335
    %v994 = vadd.f32 %v912, %v341
    %v995 = vadd.f32 %v917, %v347
    %v996 = vadd.f32 %v922, %v353
    %v997 = vadd.f32 %v927, %v359
    %v998 = vadd.f32 %v932, %v365
    %v999 = vadd.f32 %v937, %v371
    %v1000 = vadd.f32 %v942, %v377
    %v1001 = vadd.f32 %v947, %v383
    %v1002 = vadd.f32 %v952, %v389
    %v1003 = vadd.f32 %v957, %v395
    %v1004 = vadd.f32 %v962, %v401
    %v1005 = vadd.f32 %v967, %v407
    %v1006 = vadd.f32 %v972, %v413
    %1007 = vst [vmem:[#allocation10] sm:$0xff] %v975
    %1008 = vst [vmem:[#allocation10 + $0x8] sm:$0xff] %v976
    %1009 = vst [vmem:[#allocation10 + $0x10] sm:$0xff] %v977
    %1010 = vst [vmem:[#allocation10 + $0x18] sm:$0xff] %v978
    %1011 = vst [vmem:[#allocation10 + $0x20] sm:$0xff] %v979
    %1012 = vst [vmem:[#allocation10 + $0x28] sm:$0xff] %v980
    %1013 = vst [vmem:[#allocation10 + $0x30] sm:$0xff] %v981
    %1014 = vst [vmem:[#allocation10 + $0x38] sm:$0xff] %v982
    %1015 = vst [vmem:[#allocation10 + $0x40] sm:$0xff] %v983
    %1016 = vst [vmem:[#allocation10 + $0x48] sm:$0xff] %v984
    %1017 = vst [vmem:[#allocation10 + $0x50] sm:$0xff] %v985
    %1018 = vst [vmem:[#allocation10 + $0x58] sm:$0xff] %v986
    %1019 = vst [vmem:[#allocation10 + $0x60] sm:$0xff] %v987
    %1020 = vst [vmem:[#allocation10 + $0x68] sm:$0xff] %v988
    %1021 = vst [vmem:[#allocation10 + $0x70] sm:$0xff] %v989
    %1022 = vst [vmem:[#allocation10 + $0x78] sm:$0xff] %v990
    %1023 = vst [vmem:[#allocation10 + $0x80] sm:$0xff] %v991
    %1024 = vst [vmem:[#allocation10 + $0x88] sm:$0xff] %v992
    %1025 = vst [vmem:[#allocation10 + $0x90] sm:$0xff] %v993
    %1026 = vst [vmem:[#allocation10 + $0x98] sm:$0xff] %v994
    %1027 = vst [vmem:[#allocation10 + $0xa0] sm:$0xff] %v995
    %1028 = vst [vmem:[#allocation10 + $0xa8] sm:$0xff] %v996
    %1029 = vst [vmem:[#allocation10 + $0xb0] sm:$0xff] %v997
    %1030 = vst [vmem:[#allocation10 + $0xb8] sm:$0xff] %v998
    %1031 = vst [vmem:[#allocation10 + $0xc0] sm:$0xff] %v999
    %1032 = vst [vmem:[#allocation10 + $0xc8] sm:$0xff] %v1000
    %1033 = vst [vmem:[#allocation10 + $0xd0] sm:$0xff] %v1001
    %1034 = vst [vmem:[#allocation10 + $0xd8] sm:$0xff] %v1002
    %1035 = vst [vmem:[#allocation10 + $0xe0] sm:$0xff] %v1003
    %1036 = vst [vmem:[#allocation10 + $0xe8] sm:$0xff] %v1004
    %1037 = vst [vmem:[#allocation10 + $0xf0] sm:$0xff] %v1005
    %1038 = vst [vmem:[#allocation10 + $0xf8] sm:$0xff] %v1006
    // Predicated region
    $region46: #{tpu_custom_call.1} parent=1 // pred_check
      _
    $region47: #{tpu_custom_call.1} parent=1 // pred_check_branch
      %1040 = sbr.rel (0) target = $region49
    $region48: #{tpu_custom_call.1} parent=1 // pred_region
      %s1042 = ssub.s32 4096, 4096
      %1043 = vsyncadd [#allocation4], %s1042
      %s1044 = sshll.u32 [#allocation10], 4
      %s1045 = int_to_ptr.vmem [resolvable:$true] %s1044
      %1050 = dma.vmem_to_hbm [thread:$0]  %s1045, 4096, %s7, [#allocation4], 128, 128, 8
    $region49: #{tpu_custom_call.1} parent=1 // pred_fallthru
      _
    // Predicated region
    $region50: #{tpu_custom_call.1} parent=1 // pred_check
      _
    $region51: #{tpu_custom_call.1} parent=1 // pred_check_branch
      %1052 = sbr.rel (0) target = $region53
    $region52: #{tpu_custom_call.1} parent=1 // pred_region
      %1053 = dma.done [#allocation4], 4096
    $region53: #{tpu_custom_call.1} parent=1 // pred_fallthru
      _
    %1054 = vsyncpa [#allocation3], 1
    %1055 = vsyncpa [#allocation6], 1
    %1056 = vsyncpa [#allocation9], 1
    %1057 = vsyncpa [#allocation4], 1

</llo_original>
